<compile_context>
chip_gen: v5e
topology: v5e:2x2
jax: 0.10.0
libtpu: 0.0.40
codegen_flags: <defaults>
</compile_context>

<pallas_src>
import functools

import jax
import jax.numpy as jnp
from jax.experimental import pallas as pl
from jax.experimental.pallas import tpu as pltpu


def _copy_kernel(x_ref, o_ref):
    o_ref[...] = x_ref[...]


@functools.partial(jax.jit, static_argnames=("dim", "block_rows"))
def ssbh_dim_changer_for_unsqueeze(x, dim=1, block_rows=512):
    """Pallas equivalent of PyTorch `x.unsqueeze(dim)`."""
    ndim = x.ndim
    if dim < 0:
        dim = ndim + 1 + dim
    assert 0 <= dim <= ndim, f"dim={dim} out of range for rank-{ndim} input"
    out_shape = x.shape[:dim] + (1,) + x.shape[dim:]

    if x.size == 0 or ndim == 0:
        # Degenerate: empty or scalar input -- nothing for a kernel to do.
        return jnp.reshape(x, out_shape)

    # unsqueeze does not move data; run the copy on a 2-D (rows, lanes) view.
    # Both reshapes below are contiguous => metadata-only, no extra copies.
    lanes = x.shape[-1]
    rows = x.size // lanes
    x2 = jnp.reshape(x, (rows, lanes))

    # Row-tile choice: big enough to amortize the ~0.35us/step grid overhead,
    # small enough that the double-buffered in+out tiles stay well under the
    # scoped-VMEM default on v7x.  Must be a multiple of 8 (f32 sublane) or
    # equal to the full row extent.
    bytes_per_row = lanes * x2.dtype.itemsize
    vmem_rows_cap = max(8, (4 * 1024 * 1024) // max(bytes_per_row, 1))
    tb = min(block_rows, rows, vmem_rows_cap)
    if tb != rows:
        tb = max(8, (tb // 8) * 8)

    out2 = pl.pallas_call(
        _copy_kernel,
        out_shape=jax.ShapeDtypeStruct((rows, lanes), x2.dtype),
        grid=(pl.cdiv(rows, tb),),
        in_specs=[pl.BlockSpec((tb, lanes), lambda i: (i, 0))],
        out_specs=pl.BlockSpec((tb, lanes), lambda i: (i, 0)),
        compiler_params=pltpu.CompilerParams(
            dimension_semantics=("parallel",)),
    )(x2)

    # The unsqueeze itself: pure shape metadata on the copied buffer.
    return jnp.reshape(out2, out_shape)


if __name__ == "__main__":
    key = jax.random.PRNGKey(0)
    k1, k2, k3 = jax.random.split(key, 3)

    # Primary case: [B, n_sample] -> [B, 1, n_sample] (how ae_network uses it).
    x = jax.random.normal(k1, (8, 50), jnp.float32)
    y = jax.block_until_ready(ssbh_dim_changer_for_unsqueeze(x, dim=1))
    assert y.shape == (8, 1, 50)
    assert jnp.array_equal(y, jnp.expand_dims(x, 1))

    # Multi-block grid path (3 grid steps) still matches.
    x_big = jax.random.normal(k2, (24, 16), jnp.float32)
    y_big = jax.block_until_ready(
        ssbh_dim_changer_for_unsqueeze(x_big, dim=1, block_rows=8))
    assert y_big.shape == (24, 1, 16)
    assert jnp.array_equal(y_big, jnp.expand_dims(x_big, 1))

    # Higher-rank input, non-default dim.
    x3 = jax.random.normal(k3, (2, 4, 16), jnp.float32)
    y3 = jax.block_until_ready(ssbh_dim_changer_for_unsqueeze(x3, dim=2))
    assert y3.shape == (2, 4, 1, 16)
    assert jnp.array_equal(y3, jnp.expand_dims(x3, 2))

    print("KERNEL_OK")
</pallas_src>

<mosaic_0001>
module attributes {stable_mosaic.version = 11 : i64} {
  func.func @_copy_kernel(%arg0: i32, %arg1: memref<8x50xf32, #tpu.memory_space<vmem>>, %arg2: memref<8x50xf32, #tpu.memory_space<vmem>>) attributes {dimension_semantics = [#tpu.dimension_semantics<parallel>], iteration_bounds = array<i64: 1>, scalar_prefetch = 0 : i64, scratch_operands = 0 : i64, tpu.core_type = #tpu.core_type<tc>, window_params = [{transform_indices = @transform_0, window_bounds = array<i64: 8, 50>}, {transform_indices = @transform_1, window_bounds = array<i64: 8, 50>}]} {
    %c0 = arith.constant 0 : index
    %c0_0 = arith.constant 0 : index
    %0 = vector.load %arg1[%c0, %c0_0] : memref<8x50xf32, #tpu.memory_space<vmem>>, vector<8x50xf32>
    %c0_1 = arith.constant 0 : index
    %c0_2 = arith.constant 0 : index
    %1 = vector.load %arg2[%c0_1, %c0_2] : memref<8x50xf32, #tpu.memory_space<vmem>>, vector<8x50xf32>
    tpu.vector_store %arg2[%c0_1, %c0_2], %0 {strides = array<i32>} : memref<8x50xf32, #tpu.memory_space<vmem>>, vector<8x50xf32>,
    return
  }
  func.func @transform_0(%arg0: i32) -> (i32, i32) {
    %c0_i32 = arith.constant 0 : i32
    %c0_i32_0 = arith.constant 0 : i32
    return %arg0, %c0_i32 : i32, i32
  }
  func.func @transform_1(%arg0: i32) -> (i32, i32) {
    %c0_i32 = arith.constant 0 : i32
    %c0_i32_0 = arith.constant 0 : i32
    return %arg0, %c0_i32 : i32, i32
  }
}

</mosaic_0001>

<llo_original>
// kernel: ssbh_dim_changer_for_unsqueeze.1
$region0: #{ssbh_dim_changer_for_unsqueeze.1}
  #allocation0 [shape = 'u32[]', space=smem, size = 0x4, offset = 0x4, fixed_abs, tag = 'smem constant byte address 0x4 - core index']
  #allocation1 [shape = 'u32[72,128]{1,0:T(1,128)}', space=vmem, size = 0x9000, scoped, tag = 'internal scratch']
  %s0 = inlined_call_operand.hbm [shape: f32[8,50], index: 0, kind: input, shape index: {}]
  %s1 = inlined_call_operand.hbm [shape: f32[8,50], index: 1, kind: output, shape index: {}]
  %s2 = sld [smem:[#allocation0]]
  $region18: #{ssbh_dim_changer_for_unsqueeze.1} parent=0
    _
  %s4 = ssub.s32 1, %s2
  %s5 = scalar_select 0, %s4, %s2
  $region1: #{ssbh_dim_changer_for_unsqueeze.1} parent=0
    #allocation2 [shape = 'u8[4096]{0}', space=vmem, size = 0x1000, scoped, tag = 'input window, operand 0, single buffered']
    #allocation3 [shape = 's32[1]{0}', space=sflag, size = 0x4, scoped, tag = 'scoped memory for ssbh_dim_changer_for_unsqueeze.1']
    #allocation4 [shape = 's32[1]{0}', space=sflag, size = 0x4, scoped, tag = 'scoped memory for ssbh_dim_changer_for_unsqueeze.1']
    #allocation5 [shape = 'u8[4096]{0}', space=vmem, size = 0x1000, scoped, tag = 'output window, operand 0, single buffered']
    %6 = vsyncpa [#allocation3], 0
    %7 = vsyncpa [#allocation4], 0
    // Predicated region
    $region2: #{ssbh_dim_changer_for_unsqueeze.1} parent=1 // pred_check
      _
    $region3: #{ssbh_dim_changer_for_unsqueeze.1} parent=1 // pred_check_branch
      %9 = sbr.rel (0) target = $region5
    $region4: #{ssbh_dim_changer_for_unsqueeze.1} parent=1 // pred_region
      %11 = vsyncadd [#allocation3], 0
      %s13 = sshll.u32 %s0, 4
      %s14 = int_to_ptr.hbm [resolvable:$true] %s13
      %s15 = sshll.u32 [#allocation2], 4
      %s16 = int_to_ptr.vmem [resolvable:$true] %s15
      %18 = dma.hbm_to_vmem [thread:$0]  %s14, 128, %s16, [#allocation3]
    $region5: #{ssbh_dim_changer_for_unsqueeze.1} parent=1 // pred_fallthru
      _
    // Predicated region
    $region6: #{ssbh_dim_changer_for_unsqueeze.1} parent=1 // pred_check
      _
    $region7: #{ssbh_dim_changer_for_unsqueeze.1} parent=1 // pred_check_branch
      %20 = sbr.rel (0) target = $region9
    $region8: #{ssbh_dim_changer_for_unsqueeze.1} parent=1 // pred_region
      %22 = dma.done [#allocation3], 128
    $region9: #{ssbh_dim_changer_for_unsqueeze.1} parent=1 // pred_fallthru
      _
    %v23 = vld [vmem:[#allocation2] sm:$0xff]
    %vm24 = vcmask 408576
    %25 = vst.msk [vmem:[#allocation5] sm:$0xff] %vm24, %v23
    // Predicated region
    $region10: #{ssbh_dim_changer_for_unsqueeze.1} parent=1 // pred_check
      _
    $region11: #{ssbh_dim_changer_for_unsqueeze.1} parent=1 // pred_check_branch
      %27 = sbr.rel (0) target = $region13
    $region12: #{ssbh_dim_changer_for_unsqueeze.1} parent=1 // pred_region
      %29 = vsyncadd [#allocation4], 0
      %s31 = sshll.u32 [#allocation5], 4
      %s32 = int_to_ptr.vmem [resolvable:$true] %s31
      %s33 = sshll.u32 %s1, 4
      %s34 = int_to_ptr.hbm [resolvable:$true] %s33
      %36 = dma.vmem_to_hbm [thread:$0]  %s32, 128, %s34, [#allocation4]
    $region13: #{ssbh_dim_changer_for_unsqueeze.1} parent=1 // pred_fallthru
      _
    // Predicated region
    $region14: #{ssbh_dim_changer_for_unsqueeze.1} parent=1 // pred_check
      _
    $region15: #{ssbh_dim_changer_for_unsqueeze.1} parent=1 // pred_check_branch
      %38 = sbr.rel (0) target = $region17
    $region16: #{ssbh_dim_changer_for_unsqueeze.1} parent=1 // pred_region
      %40 = dma.done [#allocation4], 128
    $region17: #{ssbh_dim_changer_for_unsqueeze.1} parent=1 // pred_fallthru
      _
    %41 = vsyncpa [#allocation3], 1
    %42 = vsyncpa [#allocation4], 1

</llo_original>
